<compile_context>
chip_gen: v5e
topology: v5e:2x2
jax: 0.10.0
libtpu: 0.0.40
codegen_flags: <defaults>
</compile_context>

<pallas_src>
import functools
import math

import jax
import jax.numpy as jnp
from jax import lax
from jax.experimental import pallas as pl
from jax.experimental.pallas import tpu as pltpu


def _round_up(x, m):
    return ((x + m - 1) // m) * m


def _captioning_loss_kernel(
    logits_ref,      # (TILE_N, TILE_C) input dtype
    tgt_ref,         # (TILE_N, 1) int32
    loss_ref,        # (TILE_N, 128) f32 output (loss replicated across lanes)
    m_sc,            # (TILE_N, 1) f32 running row max
    l_sc,            # (TILE_N, 1) f32 running exp-sum
    sx_sc,           # (TILE_N, 1) f32 running sum of (valid) logits
    tx_sc,           # (TILE_N, 1) f32 running target logit
    *,
    eps,
    off_val,
    const_term,
    n_class,
    tile_c,
    mask_cols,
    need_sum,
):
    j = pl.program_id(1)

    @pl.when(j == 0)
    def _init():
        m_sc[...] = jnp.full_like(m_sc, -1e30)
        l_sc[...] = jnp.zeros_like(l_sc)
        tx_sc[...] = jnp.zeros_like(tx_sc)
        if need_sum:
            sx_sc[...] = jnp.zeros_like(sx_sc)

    x = logits_ref[...].astype(jnp.float32)                    # (TN, TC)
    tgt = tgt_ref[...]                                         # (TN, 1) int32

    # Global vocab index of each lane in this C-tile.
    col = lax.broadcasted_iota(jnp.int32, x.shape, 1) + j * tile_c

    # Online softmax accumulation (max / exp-sum), f32.
    m_prev = m_sc[...]
    m_new = jnp.maximum(m_prev, jnp.max(x, axis=1, keepdims=True))
    alpha = jnp.exp(m_prev - m_new)
    l_sc[...] = alpha * l_sc[...] + jnp.sum(
        jnp.exp(x - m_new), axis=1, keepdims=True
    )
    m_sc[...] = m_new

    # Running sum of logits over valid vocab columns (only needed when eps>0).
    if need_sum:
        xs = jnp.where(col < n_class, x, 0.0) if mask_cols else x
        sx_sc[...] += jnp.sum(xs, axis=1, keepdims=True)

    # Target logit via a masked row-sum (target always lies in a valid column).
    tx_sc[...] += jnp.sum(jnp.where(col == tgt, x, 0.0), axis=1, keepdims=True)

    @pl.when(j == pl.num_programs(1) - 1)
    def _finalize():
        logz = m_sc[...] + jnp.log(l_sc[...])                  # (TN, 1)
        log_p_tgt = tx_sc[...] - logz                          # log_softmax at target
        loss_row = const_term - (1.0 - eps) * log_p_tgt
        if need_sum:
            sum_log_p = sx_sc[...] - float(n_class) * logz     # sum_c log_softmax
            loss_row = loss_row - off_val * (sum_log_p - log_p_tgt)
        # Lane-dense (unmasked) store: replicate per-row loss across 128 lanes.
        loss_ref[...] = jnp.broadcast_to(loss_row, loss_ref.shape)


def captioning_loss_per_row(logits, target, *, label_smoothing, max_tile_c=2048):
    """Per-row smoothed-KL loss via a tiled, pipelined Pallas kernel."""
    n, c = logits.shape
    eps = float(label_smoothing)

    # Python-time constants of the smoothed target distribution.
    if c > 1 and eps > 0.0:
        off_val = eps / (c - 1)
        const_term = eps * math.log(off_val)
        if eps < 1.0:
            const_term += (1.0 - eps) * math.log(1.0 - eps)
    else:
        off_val = 0.0
        const_term = 0.0

    # --- vocab (lane) tiling ---
    if c <= max_tile_c:
        tile_c, c_pad = c, c                # full-dim block is always legal
    else:
        tile_c = max_tile_c                 # multiple of 128
        c_pad = _round_up(c, tile_c)

    # --- row (sublane) tiling: ~2 MiB f32 working set per block ---
    tile_n = max(8, min(1024, ((512 * 1024) // tile_c) // 8 * 8))
    tile_n = min(tile_n, _round_up(n, 8))
    n_pad = _round_up(n, tile_n)

    x = logits
    if c_pad != c:
        # Pad vocab with a very negative logit so exp underflows to 0.
        x = jnp.pad(x, ((0, 0), (0, c_pad - c)), constant_values=-1e9)
    if n_pad != n:
        x = jnp.pad(x, ((0, n_pad - n), (0, 0)))
    tgt = jnp.pad(target.astype(jnp.int32), (0, n_pad - n)).reshape(n_pad, 1)

    kernel = functools.partial(
        _captioning_loss_kernel,
        eps=eps,
        off_val=off_val,
        const_term=const_term,
        n_class=c,
        tile_c=tile_c,
        mask_cols=(c_pad != c),
        need_sum=(off_val != 0.0),
    )

    grid = (n_pad // tile_n, c_pad // tile_c)
    out = pl.pallas_call(
        kernel,
        out_shape=jax.ShapeDtypeStruct((n_pad, 128), jnp.float32),
        grid_spec=pltpu.PrefetchScalarGridSpec(
            num_scalar_prefetch=0,
            grid=grid,
            in_specs=[
                pl.BlockSpec((tile_n, tile_c), lambda i, j: (i, j)),
                pl.BlockSpec((tile_n, 1), lambda i, j: (i, 0)),
            ],
            out_specs=pl.BlockSpec((tile_n, 128), lambda i, j: (i, 0)),
            scratch_shapes=[pltpu.VMEM((tile_n, 1), jnp.float32)] * 4,
        ),
        compiler_params=pltpu.CompilerParams(
            dimension_semantics=("parallel", "arbitrary"),
        ),
    )(x, tgt)
    return out[:n, 0]


class CaptioningLoss:
    """JAX/Pallas port of the PyTorch CaptioningLoss module (no parameters)."""

    def __init__(self, config):
        self.label_smoothing = getattr(config, "label_smoothing", 0)
        self.drop_worst_ratio = getattr(config, "drop_worst_ratio", 0)
        self.drop_worst_after = getattr(config, "drop_worst_after", 0)
        self.iter = 0

    def __call__(self, logits, target):
        # TODO(synk): `self.iter` is Python-side state; under jax.jit the
        # `iter > drop_worst_after` condition is baked in at trace time.
        self.iter += 1
        loss = captioning_loss_per_row(
            logits, target, label_smoothing=self.label_smoothing
        )
        if self.drop_worst_ratio > 0 and self.iter > self.drop_worst_after:
            k = int(loss.shape[0] * (1 - self.drop_worst_ratio))
            # topk(largest=False): keep the k smallest per-row losses.
            neg_top, _ = lax.top_k(-loss, k)
            loss = -neg_top
        return jnp.mean(loss)


# ----------------------------- pure-JAX reference -----------------------------

def _reference_per_row(logits, target, eps):
    n, c = logits.shape
    one_hot = jax.nn.one_hot(target, c, dtype=jnp.float32)
    t = one_hot * (1.0 - eps) + (1.0 - one_hot) * (eps / (c - 1))
    log_prb = jax.nn.log_softmax(logits.astype(jnp.float32), axis=1)
    t_log_t = jnp.where(t > 0.0, t * jnp.log(jnp.maximum(t, 1e-30)), 0.0)
    return jnp.sum(t_log_t - t * log_prb, axis=1)


def _reference_loss(logits, target, eps):
    return jnp.mean(_reference_per_row(logits, target, eps))


class _Config:
    label_smoothing = 0.1
    drop_worst_ratio = 0.0
    drop_worst_after = 0


if __name__ == "__main__":
    key = jax.random.PRNGKey(0)
    k1, k2, k3, k4 = jax.random.split(key, 4)

    # --- Test 1: module forward, N = batch*seq = 2*4 rows, C = 32 classes ---
    N, C = 8, 32
    logits = jax.random.normal(k1, (N, C), dtype=jnp.float32)
    target = jax.random.randint(k2, (N,), 0, C, dtype=jnp.int32)

    loss_mod = CaptioningLoss(_Config())
    loss = jax.block_until_ready(loss_mod(logits, target))
    ref = jax.block_until_ready(
        _reference_loss(logits, target, _Config.label_smoothing)
    )
    assert jnp.allclose(loss, ref, atol=1e-5, rtol=1e-5), (loss, ref)

    # --- Test 2: row padding + vocab tiling + vocab padding path ---
    N2, C2 = 10, 200
    logits2 = jax.random.normal(k3, (N2, C2), dtype=jnp.float32)
    target2 = jax.random.randint(k4, (N2,), 0, C2, dtype=jnp.int32)
    per_row = jax.block_until_ready(
        captioning_loss_per_row(
            logits2, target2, label_smoothing=0.1, max_tile_c=128
        )
    )
    per_row_ref = jax.block_until_ready(_reference_per_row(logits2, target2, 0.1))
    assert jnp.allclose(per_row, per_row_ref, atol=1e-5, rtol=1e-5)

    # --- Test 3: eps == 0 (plain cross-entropy) fast path ---
    per_row0 = jax.block_until_ready(
        captioning_loss_per_row(logits, target, label_smoothing=0.0)
    )
    ce_ref = -jnp.take_along_axis(
        jax.nn.log_softmax(logits, axis=1), target[:, None], axis=1
    )[:, 0]
    assert jnp.allclose(per_row0, jax.block_until_ready(ce_ref), atol=1e-5, rtol=1e-5)

    print("KERNEL_OK")
</pallas_src>

<mosaic_0001>
module attributes {stable_mosaic.version = 11 : i64} {
  func.func @_captioning_loss_kernel(%arg0: i32, %arg1: i32, %arg2: memref<8x32xf32, #tpu.memory_space<vmem>>, %arg3: memref<8x1xi32, #tpu.memory_space<vmem>>, %arg4: memref<8x128xf32, #tpu.memory_space<vmem>>, %arg5: memref<8x1xf32, #tpu.memory_space<vmem>>, %arg6: memref<8x1xf32, #tpu.memory_space<vmem>>, %arg7: memref<8x1xf32, #tpu.memory_space<vmem>>, %arg8: memref<8x1xf32, #tpu.memory_space<vmem>>) attributes {dimension_semantics = [#tpu.dimension_semantics<parallel>, #tpu.dimension_semantics<arbitrary>], iteration_bounds = array<i64: 1, 1>, scalar_prefetch = 0 : i64, scratch_operands = 4 : i64, tpu.core_type = #tpu.core_type<tc>, window_params = [{transform_indices = @transform_0, window_bounds = array<i64: 8, 32>}, {transform_indices = @transform_1, window_bounds = array<i64: 8, 1>}, {transform_indices = @transform_2, window_bounds = array<i64: 8, 128>}]} {
    %c0_i32 = arith.constant 0 : i32
    %0 = arith.cmpi eq, %arg1, %c0_i32 : i32
    %1 = arith.extui %0 : i1 to i32
    %c0_i32_0 = arith.constant 0 : i32
    %2 = arith.cmpi ne, %1, %c0_i32_0 : i32
    scf.if %2 {
      %cst_26 = arith.constant -1.000000e+30 : f32
      %42 = vector.broadcast %cst_26 : f32 to vector<8x1xf32>
      %c0_27 = arith.constant 0 : index
      %c0_28 = arith.constant 0 : index
      %43 = vector.load %arg5[%c0_27, %c0_28] : memref<8x1xf32, #tpu.memory_space<vmem>>, vector<8x1xf32>
      tpu.vector_store %arg5[%c0_27, %c0_28], %42 {strides = array<i32>} : memref<8x1xf32, #tpu.memory_space<vmem>>, vector<8x1xf32>,
      %cst_29 = arith.constant 0.000000e+00 : f32
      %44 = vector.broadcast %cst_29 : f32 to vector<8x1xf32>
      %c0_30 = arith.constant 0 : index
      %c0_31 = arith.constant 0 : index
      %45 = vector.load %arg6[%c0_30, %c0_31] : memref<8x1xf32, #tpu.memory_space<vmem>>, vector<8x1xf32>
      tpu.vector_store %arg6[%c0_30, %c0_31], %44 {strides = array<i32>} : memref<8x1xf32, #tpu.memory_space<vmem>>, vector<8x1xf32>,
      %cst_32 = arith.constant 0.000000e+00 : f32
      %46 = vector.broadcast %cst_32 : f32 to vector<8x1xf32>
      %c0_33 = arith.constant 0 : index
      %c0_34 = arith.constant 0 : index
      %47 = vector.load %arg8[%c0_33, %c0_34] : memref<8x1xf32, #tpu.memory_space<vmem>>, vector<8x1xf32>
      tpu.vector_store %arg8[%c0_33, %c0_34], %46 {strides = array<i32>} : memref<8x1xf32, #tpu.memory_space<vmem>>, vector<8x1xf32>,
      %cst_35 = arith.constant 0.000000e+00 : f32
      %48 = vector.broadcast %cst_35 : f32 to vector<8x1xf32>
      %c0_36 = arith.constant 0 : index
      %c0_37 = arith.constant 0 : index
      %49 = vector.load %arg7[%c0_36, %c0_37] : memref<8x1xf32, #tpu.memory_space<vmem>>, vector<8x1xf32>
      tpu.vector_store %arg7[%c0_36, %c0_37], %48 {strides = array<i32>} : memref<8x1xf32, #tpu.memory_space<vmem>>, vector<8x1xf32>,
    } else {
    }
    %c0 = arith.constant 0 : index
    %c0_1 = arith.constant 0 : index
    %3 = vector.load %arg2[%c0, %c0_1] : memref<8x32xf32, #tpu.memory_space<vmem>>, vector<8x32xf32>
    %c0_2 = arith.constant 0 : index
    %c0_3 = arith.constant 0 : index
    %4 = vector.load %arg3[%c0_2, %c0_3] : memref<8x1xi32, #tpu.memory_space<vmem>>, vector<8x1xi32>
    %5 = tpu.iota {dimensions = array<i32: 1>} : vector<8x32xi32>
    %c32_i32 = arith.constant 32 : i32
    %6 = arith.muli %arg1, %c32_i32 : i32
    %7 = vector.broadcast %6 : i32 to vector<8x32xi32>
    %8 = arith.addi %5, %7 : vector<8x32xi32>
    %c0_4 = arith.constant 0 : index
    %c0_5 = arith.constant 0 : index
    %9 = vector.load %arg5[%c0_4, %c0_5] : memref<8x1xf32, #tpu.memory_space<vmem>>, vector<8x1xf32>
    %cst = arith.constant dense<0xFF800000> : vector<8xf32>
    %10 = vector.multi_reduction <maximumf>, %3, %cst [1] : vector<8x32xf32> to vector<8xf32>
    %11 = vector.shape_cast %10 : vector<8xf32> to vector<8x1xf32>
    %12 = arith.maximumf %9, %11 : vector<8x1xf32>
    %13 = arith.subf %9, %12 : vector<8x1xf32>
    %14 = math.exp %13 : vector<8x1xf32>
    %c0_6 = arith.constant 0 : index
    %c0_7 = arith.constant 0 : index
    %15 = vector.load %arg6[%c0_6, %c0_7] : memref<8x1xf32, #tpu.memory_space<vmem>>, vector<8x1xf32>
    %16 = arith.mulf %14, %15 : vector<8x1xf32>
    %17 = vector.broadcast %12 : vector<8x1xf32> to vector<8x32xf32>
    %18 = arith.subf %3, %17 : vector<8x32xf32>
    %19 = math.exp %18 : vector<8x32xf32>
    %cst_8 = arith.constant dense<0.000000e+00> : vector<8xf32>
    %20 = vector.multi_reduction <add>, %19, %cst_8 [1] : vector<8x32xf32> to vector<8xf32>
    %21 = vector.shape_cast %20 : vector<8xf32> to vector<8x1xf32>
    %22 = arith.addf %16, %21 : vector<8x1xf32>
    %c0_9 = arith.constant 0 : index
    %c0_10 = arith.constant 0 : index
    %23 = vector.load %arg6[%c0_9, %c0_10] : memref<8x1xf32, #tpu.memory_space<vmem>>, vector<8x1xf32>
    tpu.vector_store %arg6[%c0_9, %c0_10], %22 {strides = array<i32>} : memref<8x1xf32, #tpu.memory_space<vmem>>, vector<8x1xf32>,
    %c0_11 = arith.constant 0 : index
    %c0_12 = arith.constant 0 : index
    %24 = vector.load %arg5[%c0_11, %c0_12] : memref<8x1xf32, #tpu.memory_space<vmem>>, vector<8x1xf32>
    tpu.vector_store %arg5[%c0_11, %c0_12], %12 {strides = array<i32>} : memref<8x1xf32, #tpu.memory_space<vmem>>, vector<8x1xf32>,
    %c0_13 = arith.constant 0 : index
    %c0_14 = arith.constant 0 : index
    %25 = vector.load %arg7[%c0_13, %c0_14] : memref<8x1xf32, #tpu.memory_space<vmem>>, vector<8x1xf32>
    %cst_15 = arith.constant dense<0.000000e+00> : vector<8xf32>
    %26 = vector.multi_reduction <add>, %3, %cst_15 [1] : vector<8x32xf32> to vector<8xf32>
    %27 = vector.shape_cast %26 : vector<8xf32> to vector<8x1xf32>
    %28 = arith.addf %25, %27 : vector<8x1xf32>
    %c0_16 = arith.constant 0 : index
    %c0_17 = arith.constant 0 : index
    %29 = vector.load %arg7[%c0_16, %c0_17] : memref<8x1xf32, #tpu.memory_space<vmem>>, vector<8x1xf32>
    tpu.vector_store %arg7[%c0_16, %c0_17], %28 {strides = array<i32>} : memref<8x1xf32, #tpu.memory_space<vmem>>, vector<8x1xf32>,
    %c0_18 = arith.constant 0 : index
    %c0_19 = arith.constant 0 : index
    %30 = vector.load %arg8[%c0_18, %c0_19] : memref<8x1xf32, #tpu.memory_space<vmem>>, vector<8x1xf32>
    %31 = vector.broadcast %4 : vector<8x1xi32> to vector<8x32xi32>
    %32 = arith.cmpi eq, %8, %31 : vector<8x32xi32>
    %cst_20 = arith.constant 0.000000e+00 : f32
    %33 = vector.broadcast %cst_20 : f32 to vector<8x32xf32>
    %34 = arith.select %32, %3, %33 : vector<8x32xi1>, vector<8x32xf32>
    %cst_21 = arith.constant dense<0.000000e+00> : vector<8xf32>
    %35 = vector.multi_reduction <add>, %34, %cst_21 [1] : vector<8x32xf32> to vector<8xf32>
    %36 = vector.shape_cast %35 : vector<8xf32> to vector<8x1xf32>
    %37 = arith.addf %30, %36 : vector<8x1xf32>
    %c0_22 = arith.constant 0 : index
    %c0_23 = arith.constant 0 : index
    %38 = vector.load %arg8[%c0_22, %c0_23] : memref<8x1xf32, #tpu.memory_space<vmem>>, vector<8x1xf32>
    tpu.vector_store %arg8[%c0_22, %c0_23], %37 {strides = array<i32>} : memref<8x1xf32, #tpu.memory_space<vmem>>, vector<8x1xf32>,
    %c0_i32_24 = arith.constant 0 : i32
    %39 = arith.cmpi eq, %arg1, %c0_i32_24 : i32
    %40 = arith.extui %39 : i1 to i32
    %c0_i32_25 = arith.constant 0 : i32
    %41 = arith.cmpi ne, %40, %c0_i32_25 : i32
    scf.if %41 {
      %c0_26 = arith.constant 0 : index
      %c0_27 = arith.constant 0 : index
      %42 = vector.load %arg5[%c0_26, %c0_27] : memref<8x1xf32, #tpu.memory_space<vmem>>, vector<8x1xf32>
      %c0_28 = arith.constant 0 : index
      %c0_29 = arith.constant 0 : index
      %43 = vector.load %arg6[%c0_28, %c0_29] : memref<8x1xf32, #tpu.memory_space<vmem>>, vector<8x1xf32>
      %44 = math.log %43 : vector<8x1xf32>
      %45 = arith.addf %42, %44 : vector<8x1xf32>
      %c0_30 = arith.constant 0 : index
      %c0_31 = arith.constant 0 : index
      %46 = vector.load %arg8[%c0_30, %c0_31] : memref<8x1xf32, #tpu.memory_space<vmem>>, vector<8x1xf32>
      %47 = arith.subf %46, %45 : vector<8x1xf32>
      %cst_32 = arith.constant 0.899999976 : f32
      %48 = vector.broadcast %cst_32 : f32 to vector<8x1xf32>
      %49 = arith.mulf %48, %47 : vector<8x1xf32>
      %cst_33 = arith.constant -0.668481708 : f32
      %50 = vector.broadcast %cst_33 : f32 to vector<8x1xf32>
      %51 = arith.subf %50, %49 : vector<8x1xf32>
      %c0_34 = arith.constant 0 : index
      %c0_35 = arith.constant 0 : index
      %52 = vector.load %arg7[%c0_34, %c0_35] : memref<8x1xf32, #tpu.memory_space<vmem>>, vector<8x1xf32>
      %cst_36 = arith.constant 3.200000e+01 : f32
      %53 = vector.broadcast %cst_36 : f32 to vector<8x1xf32>
      %54 = arith.mulf %53, %45 : vector<8x1xf32>
      %55 = arith.subf %52, %54 : vector<8x1xf32>
      %56 = arith.subf %55, %47 : vector<8x1xf32>
      %cst_37 = arith.constant 0.0032258064 : f32
      %57 = vector.broadcast %cst_37 : f32 to vector<8x1xf32>
      %58 = arith.mulf %57, %56 : vector<8x1xf32>
      %59 = arith.subf %51, %58 : vector<8x1xf32>
      %60 = vector.shape_cast %59 : vector<8x1xf32> to vector<8x1xf32>
      %61 = vector.broadcast %60 : vector<8x1xf32> to vector<8x128xf32>
      %c0_38 = arith.constant 0 : index
      %c0_39 = arith.constant 0 : index
      %62 = vector.load %arg4[%c0_38, %c0_39] : memref<8x128xf32, #tpu.memory_space<vmem>>, vector<8x128xf32>
      tpu.vector_store %arg4[%c0_38, %c0_39], %61 {strides = array<i32>} : memref<8x128xf32, #tpu.memory_space<vmem>>, vector<8x128xf32>,
    } else {
    }
    return
  }
  func.func @transform_0(%arg0: i32, %arg1: i32) -> (i32, i32) {
    %c0_i32 = arith.constant 0 : i32
    return %arg0, %arg1 : i32, i32
  }
  func.func @transform_1(%arg0: i32, %arg1: i32) -> (i32, i32) {
    %c0_i32 = arith.constant 0 : i32
    %c0_i32_0 = arith.constant 0 : i32
    return %arg0, %c0_i32 : i32, i32
  }
  func.func @transform_2(%arg0: i32, %arg1: i32) -> (i32, i32) {
    %c0_i32 = arith.constant 0 : i32
    %c0_i32_0 = arith.constant 0 : i32
    return %arg0, %c0_i32 : i32, i32
  }
}

</mosaic_0001>

<llo_original>
// kernel: tpu_custom_call.1
$region0: #{tpu_custom_call.1}
  #allocation0 [shape = 'u32[]', space=smem, size = 0x4, offset = 0x4, fixed_abs, tag = 'smem constant byte address 0x4 - core index']
  #allocation1 [shape = 'u32[72,128]{1,0:T(1,128)}', space=vmem, size = 0x9000, scoped, tag = 'internal scratch']
  #allocation2 [shape = 'f32[8,1]{1,0:T(8,128)}', space=vmem, size = 0x1000, scoped, tag = 'scratch operand']
  #allocation3 [shape = 'f32[8,1]{1,0:T(8,128)}', space=vmem, size = 0x1000, scoped, tag = 'scratch operand']
  #allocation4 [shape = 'f32[8,1]{1,0:T(8,128)}', space=vmem, size = 0x1000, scoped, tag = 'scratch operand']
  #allocation5 [shape = 'f32[8,1]{1,0:T(8,128)}', space=vmem, size = 0x1000, scoped, tag = 'scratch operand']
  %s0 = inlined_call_operand.vmem [shape: f32[8,32], index: 0, kind: input, shape index: {}]
  %s1 = inlined_call_operand.vmem [shape: s32[8,1], index: 1, kind: input, shape index: {}]
  %s2 = inlined_call_operand.hbm [shape: f32[8,128], index: 2, kind: output, shape index: {}]
  %s3 = sld [smem:[#allocation0]]
  $region26: #{tpu_custom_call.1} parent=0
    _
  %s5 = ssub.s32 1, %s3
  %s6 = scalar_select 0, %s5, %s3
  $region1: #{tpu_custom_call.1} parent=0
    #allocation6 [shape = 'u8[4096]{0}', space=vmem, size = 0x1000, scoped, tag = 'output window, operand 0, single buffered']
    #allocation7 [shape = 's32[1]{0}', space=sflag, size = 0x4, scoped, tag = 'scoped memory for tpu_custom_call.1']
    %7 = vsyncpa [#allocation7], 0
    // Predicated region
    $region2: #{tpu_custom_call.1} parent=1 // pred_check
      _
    $region3: #{tpu_custom_call.1} parent=1 // pred_check_branch
      %9 = sbr.rel (0) target = $region5
    $region4: #{tpu_custom_call.1} parent=1 // pred_region
      _
    $region5: #{tpu_custom_call.1} parent=1 // pred_fallthru
      _
    // Predicated region
    $region6: #{tpu_custom_call.1} parent=1 // pred_check
      _
    $region7: #{tpu_custom_call.1} parent=1 // pred_check_branch
      %11 = sbr.rel (0) target = $region9
    $region8: #{tpu_custom_call.1} parent=1 // pred_region
      _
    $region9: #{tpu_custom_call.1} parent=1 // pred_fallthru
      _
    %p12 = scmp.eq.s32.totalorder 0, 0
    // Predicated region
    $region10: #{tpu_custom_call.1} parent=1 // pred_check
      %p13 = pneg %p12
    $region11: #{tpu_custom_call.1} parent=1 // pred_check_branch
      %15 = sbr.rel (%p13) target = $region13
    $region12: #{tpu_custom_call.1} parent=1 // pred_region
      %vm16 = vcmask 7168
      %17 = vst.msk [vmem:[#allocation2] sm:$0xff] %vm16, -1e+30
      %18 = vst.msk [vmem:[#allocation3] sm:$0xff] %vm16, 0.0
      %19 = vst.msk [vmem:[#allocation5] sm:$0xff] %vm16, 0.0
      %20 = vst.msk [vmem:[#allocation4] sm:$0xff] %vm16, 0.0
    $region13: #{tpu_custom_call.1} parent=1 // pred_fallthru
      _
    %v21 = vld [vmem:[%s0] sm:$0xff]
    %v22 = vld [vmem:[%s1] sm:$0xff]
    %v23 = vlaneseq
    %v24 = vand.u32 %v23, 127
    %s25 = smul.u32 0, 32
    %v26 = vstv %s25
    %v27 = vadd.s32 %v24, %v26
    %v28 = vld [vmem:[#allocation2] sm:$0xff]
    %vm29 = vcmask 261120
    %v30 = vsel %vm29, %v21, -inf
    %31 = vmax.xlane.f32.xlu0 %v30
    %v32 = vpop.xlane.xlu0 %31
    %v33 = vmax.f32 %v28, %v32
    %v34 = vsub.f32 %v28, %v33
    %v35 = vmul.f32 %v34, 1.442695
    %v36 = vpow.pop %v35
    %v37 = vld [vmem:[#allocation3] sm:$0xff]
    %v38 = vmul.f32 %v36, %v37
    %40 = vset.pattern.permute.xlu0 0
    %41 = vperm.xlu0 %40, %v33
    %v42 = vpop.permute.xlu0 %41
    %v44 = vsub.f32 %v21, %v42
    %v45 = vmul.f32 %v44, 1.442695
    %v46 = vpow.pop %v45
    %v47 = vsel %vm29, %v46, 0.0
    %48 = vadd.xlane.f32.xlu0 %v47
    %v49 = vpop.xlane.xlu0 %48
    %v50 = vadd.f32 %v38, %v49
    %vm51 = vcmask 7168
    %52 = vst.msk [vmem:[#allocation3] sm:$0xff] %vm51, %v50
    %53 = vst.msk [vmem:[#allocation2] sm:$0xff] %vm51, %v33
    %v54 = vld [vmem:[#allocation4] sm:$0xff]
    %v55 = vsel %vm29, %v21, 0.0
    %56 = vadd.xlane.f32.xlu0 %v55
    %v57 = vpop.xlane.xlu0 %56
    %v58 = vadd.f32 %v54, %v57
    %59 = vst.msk [vmem:[#allocation4] sm:$0xff] %vm51, %v58
    %v60 = vld [vmem:[#allocation5] sm:$0xff]
    %61 = vset.pattern.permute.xlu0 0
    %62 = vperm.xlu0 %61, %v22
    %v63 = vpop.permute.xlu0 %62
    %vm64 = vcmp.eq.s32.totalorder %v27, %v63
    %v65 = vsel %vm64, %v21, 0.0
    %v66 = vsel %vm29, %v65, 0.0
    %67 = vadd.xlane.f32.xlu0 %v66
    %v68 = vpop.xlane.xlu0 %67
    %v69 = vadd.f32 %v60, %v68
    %70 = vst.msk [vmem:[#allocation5] sm:$0xff] %vm51, %v69
    // Predicated region
    $region14: #{tpu_custom_call.1} parent=1 // pred_check
      %p71 = pneg %p12
    $region15: #{tpu_custom_call.1} parent=1 // pred_check_branch
      %73 = sbr.rel (%p71) target = $region17
    $region16: #{tpu_custom_call.1} parent=1 // pred_region
      %v74 = vld [vmem:[#allocation2] sm:$0xff]
      %v75 = vld [vmem:[#allocation3] sm:$0xff]
      %v76 = vlog2.pop %v75
      %v77 = vmul.f32 %v76, 0.6931472
      %v78 = vadd.f32 %v74, %v77
      %v79 = vld [vmem:[#allocation5] sm:$0xff]
      %v80 = vsub.f32 %v79, %v78
      %v81 = vmul.f32 %v80, 0.9
      %v82 = vsub.f32 -0.6684817, %v81
      %v83 = vld [vmem:[#allocation4] sm:$0xff]
      %v84 = vmul.f32 %v78, 32.0
      %v85 = vsub.f32 %v83, %v84
      %v86 = vsub.f32 %v85, %v80
      %v87 = vmul.f32 %v86, 0.0032258064
      %v88 = vsub.f32 %v82, %v87
      %90 = vset.pattern.permute.xlu0 0
      %91 = vperm.xlu0 %90, %v88
      %v92 = vpop.permute.xlu0 %91
      %94 = vst [vmem:[#allocation6] sm:$0xff] %v92
    $region17: #{tpu_custom_call.1} parent=1 // pred_fallthru
      _
    // Predicated region
    $region18: #{tpu_custom_call.1} parent=1 // pred_check
      _
    $region19: #{tpu_custom_call.1} parent=1 // pred_check_branch
      %96 = sbr.rel (0) target = $region21
    $region20: #{tpu_custom_call.1} parent=1 // pred_region
      %98 = vsyncadd [#allocation7], 0
      %s100 = sshll.u32 [#allocation6], 4
      %s101 = int_to_ptr.vmem [resolvable:$true] %s100
      %s102 = sshll.u32 %s2, 4
      %s103 = int_to_ptr.hbm [resolvable:$true] %s102
      %105 = dma.vmem_to_hbm [thread:$0]  %s101, 128, %s103, [#allocation7]
    $region21: #{tpu_custom_call.1} parent=1 // pred_fallthru
      _
    // Predicated region
    $region22: #{tpu_custom_call.1} parent=1 // pred_check
      _
    $region23: #{tpu_custom_call.1} parent=1 // pred_check_branch
      %107 = sbr.rel (0) target = $region25
    $region24: #{tpu_custom_call.1} parent=1 // pred_region
      %109 = dma.done [#allocation7], 128
    $region25: #{tpu_custom_call.1} parent=1 // pred_fallthru
      _
    %110 = vsyncpa [#allocation7], 1

</llo_original>
